<compile_context>
chip_gen: v5e
topology: v5e:2x2
jax: 0.10.0
libtpu: 0.0.40
codegen_flags: <defaults>
</compile_context>

<pallas_src>
import functools
import math

import jax
import jax.numpy as jnp
from jax.experimental import pallas as pl
from jax.experimental.pallas import tpu as pltpu


_TILE_B_MAX = 4096


def _round_up(x, m):
    return -(-x // m) * m


def _use_split_l2():
    """128x128-MXU parts (v5e / v4 / v3) prefer two 128x128 layer-2 matmuls."""
    try:
        kind = jax.devices()[0].device_kind.lower()
    except Exception:
        return False
    return ("v5" in kind) or ("v4" in kind) or ("v3" in kind)


# --------------------------------------------------------------------------
# Fused actor+critic kernel
# --------------------------------------------------------------------------
def _agent_kernel(u_ref, x_ref,
                  w1_ref, b1_ref, w2_ref, b2_ref, w3_ref, b3_ref,
                  out_ref, *, split_l2):
    f32 = jnp.float32
    bf16 = jnp.bfloat16

    xb = x_ref[...].astype(bf16)                                  # [T, 4]

    # Layer 1 (actor ‖ critic): one [T,4] x [4,256] matmul.
    h1 = jnp.dot(xb, w1_ref[...], preferred_element_type=f32)     # [T, 256]
    h1 = jnp.maximum(h1 + b1_ref[...], 0.0)

    if split_l2:
        # v5e-class path: two native 128x128 matmuls (diag blocks of w2_ref),
        # heads fused via the two 128-row halves of w3_ref.
        h1a = h1[:, :128].astype(bf16)
        h1c = h1[:, 128:].astype(bf16)
        h2a = jnp.maximum(
            jnp.dot(h1a, w2_ref[:128, :128], preferred_element_type=f32)
            + b2_ref[:, :128], 0.0)
        h2c = jnp.maximum(
            jnp.dot(h1c, w2_ref[128:, 128:], preferred_element_type=f32)
            + b2_ref[:, 128:], 0.0)
        head = (jnp.dot(h2a.astype(bf16), w3_ref[:128, :],
                        preferred_element_type=f32)
                + jnp.dot(h2c.astype(bf16), w3_ref[128:, :],
                          preferred_element_type=f32)
                + b3_ref[...])                                    # [T, 8]
    else:
        # v6e / v7x path: block-diagonal [256,256] layer-2, one fused head.
        h2 = jnp.dot(h1.astype(bf16), w2_ref[...],
                     preferred_element_type=f32)                  # [T, 256]
        h2 = jnp.maximum(h2 + b2_ref[...], 0.0)
        head = jnp.dot(h2.astype(bf16), w3_ref[...],
                       preferred_element_type=f32) + b3_ref[...]  # [T, 8]

    l0 = head[:, 0:1]
    l1 = head[:, 1:2]
    value = head[:, 2:3]

    # Numerically stable 2-way log-softmax on column slices (VPU only).
    m = jnp.maximum(l0, l1)
    lse = m + jnp.log(jnp.exp(l0 - m) + jnp.exp(l1 - m))
    logp0 = l0 - lse
    logp1 = l1 - lse

    # Inverse-CDF categorical sample from a host-supplied uniform.
    u = u_ref[...]                                                # [T, 1]
    take1 = u >= jnp.exp(logp0)                                   # P(a=0)=p0
    act_f = take1.astype(f32)
    logp_a = jnp.where(take1, logp1, logp0)                       # fused gather

    # Narrow [T, 8] output: direct column-slice stores (no iota/where slab).
    out_ref[:, 0:1] = logp_a
    out_ref[:, 1:2] = act_f
    out_ref[:, 2:3] = logp0
    out_ref[:, 3:4] = logp1
    out_ref[:, 4:5] = value
    out_ref[:, 5:8] = jnp.zeros((logp_a.shape[0], 3), f32)


# --------------------------------------------------------------------------
# Critic-only kernel (agent.value path)
# --------------------------------------------------------------------------
def _critic_kernel(x_ref, c1_ref, cb1_ref, c2_ref, cb2_ref, c3_ref, cb3_ref,
                   out_ref):
    f32 = jnp.float32
    bf16 = jnp.bfloat16
    xb = x_ref[...].astype(bf16)
    h1 = jnp.maximum(
        jnp.dot(xb, c1_ref[...], preferred_element_type=f32) + cb1_ref[...],
        0.0)
    h2 = jnp.maximum(
        jnp.dot(h1.astype(bf16), c2_ref[...], preferred_element_type=f32)
        + cb2_ref[...], 0.0)
    out_ref[...] = (jnp.dot(h2.astype(bf16), c3_ref[...],
                            preferred_element_type=f32) + cb3_ref[...])


# --------------------------------------------------------------------------
# Host-side helpers
# --------------------------------------------------------------------------
def _prepare_batch(state):
    B = state.shape[0]
    Bp = max(8, _round_up(B, 8))
    if Bp <= 256:
        tile = Bp                      # tiny batch: single grid step
    else:
        # >= 2 grid steps so a 2-TensorCore part (v7x) can split the batch.
        tile = min(_TILE_B_MAX, _round_up(pl.cdiv(Bp, 2), 128))
    Bp = _round_up(Bp, tile)
    if Bp != B:
        state = jnp.pad(state, ((0, Bp - B), (0, 0)))
    return state, B, Bp, tile


def _pack_actor_critic(params):
    """Concatenate actor+critic weights; weights bf16, biases f32."""
    (w1, b1, w2, b2, w3, b3, c1, cb1, c2, cb2, c3, cb3) = params
    bf16 = jnp.bfloat16
    f32 = jnp.float32
    W1 = jnp.concatenate([w1, c1], axis=1).astype(bf16)            # [4, 256]
    B1 = jnp.concatenate([b1, cb1], axis=1).astype(f32)            # [1, 256]
    W2 = jnp.zeros((256, 256), f32)
    W2 = W2.at[:128, :128].set(w2).at[128:, 128:].set(c2).astype(bf16)
    B2 = jnp.concatenate([b2, cb2], axis=1).astype(f32)            # [1, 256]
    W3 = jnp.zeros((256, 8), f32)
    W3 = W3.at[:128, 0:2].set(w3).at[128:, 2:3].set(c3).astype(bf16)
    B3 = jnp.zeros((1, 8), f32)
    B3 = B3.at[:, 0:2].set(b3).at[:, 2:3].set(cb3)
    return W1, B1, W2, B2, W3, B3


def agent_fused(state, params, key):
    """One fused actor+critic launch.

    Returns (logp_sampled[B], action[B] int32, logp0[B], logp1[B], value[B,1]).
    """
    state = jnp.asarray(state, jnp.float32)
    state, B, Bp, tile = _prepare_batch(state)
    grid = (Bp // tile,)

    W1, B1, W2, B2, W3, B3 = _pack_actor_critic(params)
    uniforms = jax.random.uniform(key, (Bp, 1), jnp.float32)

    def data_spec(cols):
        return pl.BlockSpec((tile, cols), lambda i: (i, 0))

    def resident(arr):
        # Index-invariant -> weights stay VMEM-resident across grid steps.
        return pl.BlockSpec(arr.shape, lambda i: (0, 0))

    cost = pl.CostEstimate(
        flops=int(68352 * Bp),                       # actor + critic matmuls
        transcendentals=int(4 * Bp),                 # exp/log in softmax+sample
        bytes_accessed=int(Bp * (4 + 1 + 8) * 4 + 140_000),
    )

    kernel = functools.partial(_agent_kernel, split_l2=_use_split_l2())

    out = pl.pallas_call(
        kernel,
        out_shape=jax.ShapeDtypeStruct((Bp, 8), jnp.float32),
        grid_spec=pltpu.PrefetchScalarGridSpec(
            num_scalar_prefetch=0,
            grid=grid,
            in_specs=[
                data_spec(1),                         # uniforms
                data_spec(4),                         # state
                resident(W1), resident(B1),
                resident(W2), resident(B2),
                resident(W3), resident(B3),
            ],
            out_specs=pl.BlockSpec((tile, 8), lambda i: (i, 0)),
        ),
        compiler_params=pltpu.CompilerParams(
            dimension_semantics=("parallel",),
            vmem_limit_bytes=32 * 1024 * 1024),
        cost_estimate=cost,
    )(uniforms, state, W1, B1, W2, B2, W3, B3)

    logp_a = out[:B, 0]
    action = out[:B, 1].astype(jnp.int32)
    logp0 = out[:B, 2]
    logp1 = out[:B, 3]
    value = out[:B, 4:5]
    return logp_a, action, logp0, logp1, value


def agent_forward(state, params, key, action=None):
    """Mirrors Agent.forward: returns (log_prob(action), action)."""
    logp_a, sampled, logp0, logp1, _ = agent_fused(state, params, key)
    if action is None:
        return logp_a, sampled
    action = jnp.asarray(action, jnp.int32)
    log_prob = jnp.where(action == 0, logp0, logp1)
    return log_prob, action


def agent_forward_and_value(state, params, key):
    """PPO convenience: one kernel launch -> (log_prob, action, value)."""
    logp_a, action, _, _, value = agent_fused(state, params, key)
    return logp_a, action, value


def agent_value(state, params):
    """Mirrors Agent.value: critic-only kernel, returns [B, 1]."""
    (_, _, _, _, _, _, c1, cb1, c2, cb2, c3, cb3) = params
    state = jnp.asarray(state, jnp.float32)
    state, B, Bp, tile = _prepare_batch(state)
    grid = (Bp // tile,)

    bf16 = jnp.bfloat16
    c1b, c2b, c3b = c1.astype(bf16), c2.astype(bf16), c3.astype(bf16)

    def resident(arr):
        return pl.BlockSpec(arr.shape, lambda i: (0, 0))

    out = pl.pallas_call(
        _critic_kernel,
        out_shape=jax.ShapeDtypeStruct((Bp, 1), jnp.float32),
        grid_spec=pltpu.PrefetchScalarGridSpec(
            num_scalar_prefetch=0,
            grid=grid,
            in_specs=[
                pl.BlockSpec((tile, 4), lambda i: (i, 0)),
                resident(c1b), resident(cb1),
                resident(c2b), resident(cb2),
                resident(c3b), resident(cb3),
            ],
            out_specs=pl.BlockSpec((tile, 1), lambda i: (i, 0)),
        ),
        compiler_params=pltpu.CompilerParams(
            dimension_semantics=("parallel",),
            vmem_limit_bytes=32 * 1024 * 1024),
        cost_estimate=pl.CostEstimate(
            flops=int(34048 * Bp), transcendentals=0,
            bytes_accessed=int(Bp * 5 * 4 + 70_000)),
    )(state, c1b, cb1, c2b, cb2, c3b, cb3)
    return out[:B]


# --------------------------------------------------------------------------
# Parameter init (matches torch nn.Linear default init; W stored as [in, out])
# --------------------------------------------------------------------------
def init_linear(key, fan_in, fan_out):
    kw, kb = jax.random.split(key)
    bound = 1.0 / math.sqrt(fan_in)
    w = jax.random.uniform(kw, (fan_in, fan_out), jnp.float32, -bound, bound)
    b = jax.random.uniform(kb, (1, fan_out), jnp.float32, -bound, bound)
    return w, b


def init_agent_params(key):
    ks = jax.random.split(key, 6)
    w1, b1 = init_linear(ks[0], 4, 128)
    w2, b2 = init_linear(ks[1], 128, 128)
    w3, b3 = init_linear(ks[2], 128, 2)
    c1, cb1 = init_linear(ks[3], 4, 128)
    c2, cb2 = init_linear(ks[4], 128, 128)
    c3, cb3 = init_linear(ks[5], 128, 1)
    return (w1, b1, w2, b2, w3, b3, c1, cb1, c2, cb2, c3, cb3)


if __name__ == "__main__":
    root = jax.random.PRNGKey(0)
    kp, kx, ks = jax.random.split(root, 3)

    params = init_agent_params(kp)

    # Small batch of CartPole-like states: [B, 4]
    B = 8
    state = jax.random.normal(kx, (B, 4), jnp.float32)

    # sample path (action=None), like Agent.forward(state)
    log_prob, action = agent_forward(state, params, ks, action=None)
    jax.block_until_ready((log_prob, action))

    # explicit-action path, like Agent.forward(state, action)
    log_prob2, action2 = agent_forward(state, params, ks, action=action)
    jax.block_until_ready((log_prob2, action2))

    # critic path, like Agent.value(state)
    value = agent_value(state, params)
    jax.block_until_ready(value)

    assert log_prob.shape == (B,) and action.shape == (B,)
    assert value.shape == (B, 1)
    assert bool(jnp.all((action == 0) | (action == 1)))
    assert bool(jnp.all(log_prob <= 0.0))
    assert bool(jnp.allclose(log_prob, log_prob2, atol=1e-6))

    # f32 reference check (kernel uses bf16 matmuls -> loose tolerance)
    def ref_mlp(x, w1, b1, w2, b2, w3, b3):
        h1 = jnp.maximum(x @ w1 + b1, 0.0)
        h2 = jnp.maximum(h1 @ w2 + b2, 0.0)
        return h2 @ w3 + b3

    logits_ref = ref_mlp(state, *params[:6])
    logp_ref = jax.nn.log_softmax(logits_ref, axis=-1)
    lp_ref = jnp.take_along_axis(logp_ref, action[:, None], axis=-1)[:, 0]
    assert bool(jnp.allclose(log_prob, lp_ref, atol=5e-2))

    value_ref = ref_mlp(state, *params[6:])
    assert bool(jnp.allclose(value, value_ref, atol=5e-2))

    print("KERNEL_OK")
</pallas_src>

<mosaic_0001>
module attributes {stable_mosaic.version = 11 : i64} {
  func.func @_agent_kernel(%arg0: i32, %arg1: memref<8x1xf32, #tpu.memory_space<vmem>>, %arg2: memref<8x4xf32, #tpu.memory_space<vmem>>, %arg3: memref<4x256xbf16, #tpu.memory_space<vmem>>, %arg4: memref<1x256xf32, #tpu.memory_space<vmem>>, %arg5: memref<256x256xbf16, #tpu.memory_space<vmem>>, %arg6: memref<1x256xf32, #tpu.memory_space<vmem>>, %arg7: memref<256x8xbf16, #tpu.memory_space<vmem>>, %arg8: memref<1x8xf32, #tpu.memory_space<vmem>>, %arg9: memref<8x8xf32, #tpu.memory_space<vmem>>) attributes {dimension_semantics = [#tpu.dimension_semantics<parallel>], iteration_bounds = array<i64: 1>, scalar_prefetch = 0 : i64, scratch_operands = 0 : i64, tpu.core_type = #tpu.core_type<tc>, window_params = [{transform_indices = @transform_0, window_bounds = array<i64: 8, 1>}, {transform_indices = @transform_1, window_bounds = array<i64: 8, 4>}, {pipeline_mode = #tpu.pipeline_mode<synchronous>, transform_indices = @transform_2, window_bounds = array<i64: 4, 256>}, {pipeline_mode = #tpu.pipeline_mode<synchronous>, transform_indices = @transform_3, window_bounds = array<i64: 1, 256>}, {pipeline_mode = #tpu.pipeline_mode<synchronous>, transform_indices = @transform_4, window_bounds = array<i64: 256, 256>}, {pipeline_mode = #tpu.pipeline_mode<synchronous>, transform_indices = @transform_5, window_bounds = array<i64: 1, 256>}, {pipeline_mode = #tpu.pipeline_mode<synchronous>, transform_indices = @transform_6, window_bounds = array<i64: 256, 8>}, {pipeline_mode = #tpu.pipeline_mode<synchronous>, transform_indices = @transform_7, window_bounds = array<i64: 1, 8>}, {transform_indices = @transform_8, window_bounds = array<i64: 8, 8>}]} {
    %c0 = arith.constant 0 : index
    %c0_0 = arith.constant 0 : index
    %0 = vector.load %arg2[%c0, %c0_0] : memref<8x4xf32, #tpu.memory_space<vmem>>, vector<8x4xf32>
    %1 = arith.truncf %0 : vector<8x4xf32> to vector<8x4xbf16>
    %c0_1 = arith.constant 0 : index
    %c0_2 = arith.constant 0 : index
    %2 = vector.load %arg3[%c0_1, %c0_2] : memref<4x256xbf16, #tpu.memory_space<vmem>>, vector<4x256xbf16>
    %cst = arith.constant dense<0.000000e+00> : vector<8x256xf32>
    %3 = tpu.matmul %1, %2, %cst {dimension_numbers = #tpu.dot_dimension_numbers<[1], [0], [0], [1], [0, 0, 1, 1], [], []>} : vector<8x4xbf16>, vector<4x256xbf16>, vector<8x256xf32> -> vector<8x256xf32>
    %c0_3 = arith.constant 0 : index
    %c0_4 = arith.constant 0 : index
    %4 = vector.load %arg4[%c0_3, %c0_4] : memref<1x256xf32, #tpu.memory_space<vmem>>, vector<1x256xf32>
    %5 = vector.broadcast %4 : vector<1x256xf32> to vector<8x256xf32>
    %6 = arith.addf %3, %5 : vector<8x256xf32>
    %cst_5 = arith.constant 0.000000e+00 : f32
    %7 = vector.broadcast %cst_5 : f32 to vector<8x256xf32>
    %8 = arith.maximumf %6, %7 : vector<8x256xf32>
    %9 = arith.truncf %8 : vector<8x256xf32> to vector<8x256xbf16>
    %c0_6 = arith.constant 0 : index
    %c0_7 = arith.constant 0 : index
    %10 = vector.load %arg5[%c0_6, %c0_7] : memref<256x256xbf16, #tpu.memory_space<vmem>>, vector<256x256xbf16>
    %cst_8 = arith.constant dense<0.000000e+00> : vector<8x256xf32>
    %11 = tpu.matmul %9, %10, %cst_8 {dimension_numbers = #tpu.dot_dimension_numbers<[1], [0], [0], [1], [0, 0, 1, 1], [], []>} : vector<8x256xbf16>, vector<256x256xbf16>, vector<8x256xf32> -> vector<8x256xf32>
    %c0_9 = arith.constant 0 : index
    %c0_10 = arith.constant 0 : index
    %12 = vector.load %arg6[%c0_9, %c0_10] : memref<1x256xf32, #tpu.memory_space<vmem>>, vector<1x256xf32>
    %13 = vector.broadcast %12 : vector<1x256xf32> to vector<8x256xf32>
    %14 = arith.addf %11, %13 : vector<8x256xf32>
    %cst_11 = arith.constant 0.000000e+00 : f32
    %15 = vector.broadcast %cst_11 : f32 to vector<8x256xf32>
    %16 = arith.maximumf %14, %15 : vector<8x256xf32>
    %17 = arith.truncf %16 : vector<8x256xf32> to vector<8x256xbf16>
    %c0_12 = arith.constant 0 : index
    %c0_13 = arith.constant 0 : index
    %18 = vector.load %arg7[%c0_12, %c0_13] : memref<256x8xbf16, #tpu.memory_space<vmem>>, vector<256x8xbf16>
    %cst_14 = arith.constant dense<0.000000e+00> : vector<8x8xf32>
    %19 = tpu.matmul %17, %18, %cst_14 {dimension_numbers = #tpu.dot_dimension_numbers<[1], [0], [0], [1], [0, 0, 1, 1], [], []>} : vector<8x256xbf16>, vector<256x8xbf16>, vector<8x8xf32> -> vector<8x8xf32>
    %c0_15 = arith.constant 0 : index
    %c0_16 = arith.constant 0 : index
    %20 = vector.load %arg8[%c0_15, %c0_16] : memref<1x8xf32, #tpu.memory_space<vmem>>, vector<1x8xf32>
    %21 = vector.broadcast %20 : vector<1x8xf32> to vector<8x8xf32>
    %22 = arith.addf %19, %21 : vector<8x8xf32>
    %23 = vector.extract_strided_slice %22 {offsets = [0, 0], sizes = [8, 1], strides = [1, 1]} : vector<8x8xf32> to vector<8x1xf32>
    %24 = vector.extract_strided_slice %22 {offsets = [0, 1], sizes = [8, 1], strides = [1, 1]} : vector<8x8xf32> to vector<8x1xf32>
    %25 = vector.extract_strided_slice %22 {offsets = [0, 2], sizes = [8, 1], strides = [1, 1]} : vector<8x8xf32> to vector<8x1xf32>
    %26 = arith.maximumf %23, %24 : vector<8x1xf32>
    %27 = arith.subf %23, %26 : vector<8x1xf32>
    %28 = math.exp %27 : vector<8x1xf32>
    %29 = arith.subf %24, %26 : vector<8x1xf32>
    %30 = math.exp %29 : vector<8x1xf32>
    %31 = arith.addf %28, %30 : vector<8x1xf32>
    %32 = math.log %31 : vector<8x1xf32>
    %33 = arith.addf %26, %32 : vector<8x1xf32>
    %34 = arith.subf %23, %33 : vector<8x1xf32>
    %35 = arith.subf %24, %33 : vector<8x1xf32>
    %c0_17 = arith.constant 0 : index
    %c0_18 = arith.constant 0 : index
    %36 = vector.load %arg1[%c0_17, %c0_18] : memref<8x1xf32, #tpu.memory_space<vmem>>, vector<8x1xf32>
    %37 = math.exp %34 : vector<8x1xf32>
    %38 = arith.cmpf oge, %36, %37 : vector<8x1xf32>
    %39 = arith.extui %38 : vector<8x1xi1> to vector<8x1xi32>
    %40 = arith.sitofp %39 : vector<8x1xi32> to vector<8x1xf32>
    %41 = arith.select %38, %35, %34 : vector<8x1xi1>, vector<8x1xf32>
    %c0_19 = arith.constant 0 : index
    %c0_20 = arith.constant 0 : index
    %42 = vector.load %arg9[%c0_19, %c0_20] : memref<8x8xf32, #tpu.memory_space<vmem>>, vector<8x1xf32>
    tpu.vector_store %arg9[%c0_19, %c0_20], %41 {strides = array<i32>} : memref<8x8xf32, #tpu.memory_space<vmem>>, vector<8x1xf32>,
    %c0_21 = arith.constant 0 : index
    %c1 = arith.constant 1 : index
    %43 = vector.load %arg9[%c0_21, %c1] : memref<8x8xf32, #tpu.memory_space<vmem>>, vector<8x1xf32>
    tpu.vector_store %arg9[%c0_21, %c1], %40 {strides = array<i32>} : memref<8x8xf32, #tpu.memory_space<vmem>>, vector<8x1xf32>,
    %c0_22 = arith.constant 0 : index
    %c2 = arith.constant 2 : index
    %44 = vector.load %arg9[%c0_22, %c2] : memref<8x8xf32, #tpu.memory_space<vmem>>, vector<8x1xf32>
    tpu.vector_store %arg9[%c0_22, %c2], %34 {strides = array<i32>} : memref<8x8xf32, #tpu.memory_space<vmem>>, vector<8x1xf32>,
    %c0_23 = arith.constant 0 : index
    %c3 = arith.constant 3 : index
    %45 = vector.load %arg9[%c0_23, %c3] : memref<8x8xf32, #tpu.memory_space<vmem>>, vector<8x1xf32>
    tpu.vector_store %arg9[%c0_23, %c3], %35 {strides = array<i32>} : memref<8x8xf32, #tpu.memory_space<vmem>>, vector<8x1xf32>,
    %c0_24 = arith.constant 0 : index
    %c4 = arith.constant 4 : index
    %46 = vector.load %arg9[%c0_24, %c4] : memref<8x8xf32, #tpu.memory_space<vmem>>, vector<8x1xf32>
    tpu.vector_store %arg9[%c0_24, %c4], %25 {strides = array<i32>} : memref<8x8xf32, #tpu.memory_space<vmem>>, vector<8x1xf32>,
    %cst_25 = arith.constant 0.000000e+00 : f32
    %47 = vector.broadcast %cst_25 : f32 to vector<8x3xf32>
    %c0_26 = arith.constant 0 : index
    %c5 = arith.constant 5 : index
    %48 = vector.load %arg9[%c0_26, %c5] : memref<8x8xf32, #tpu.memory_space<vmem>>, vector<8x3xf32>
    tpu.vector_store %arg9[%c0_26, %c5], %47 {strides = array<i32>} : memref<8x8xf32, #tpu.memory_space<vmem>>, vector<8x3xf32>,
    return
  }
  func.func @transform_0(%arg0: i32) -> (i32, i32) {
    %c0_i32 = arith.constant 0 : i32
    %c0_i32_0 = arith.constant 0 : i32
    return %arg0, %c0_i32 : i32, i32
  }
  func.func @transform_1(%arg0: i32) -> (i32, i32) {
    %c0_i32 = arith.constant 0 : i32
    %c0_i32_0 = arith.constant 0 : i32
    return %arg0, %c0_i32 : i32, i32
  }
  func.func @transform_2(%arg0: i32) -> (i32, i32) {
    %c0_i32 = arith.constant 0 : i32
    %c0_i32_0 = arith.constant 0 : i32
    %c0_i32_1 = arith.constant 0 : i32
    return %c0_i32, %c0_i32_0 : i32, i32
  }
  func.func @transform_3(%arg0: i32) -> (i32, i32) {
    %c0_i32 = arith.constant 0 : i32
    %c0_i32_0 = arith.constant 0 : i32
    %c0_i32_1 = arith.constant 0 : i32
    return %c0_i32, %c0_i32_0 : i32, i32
  }
  func.func @transform_4(%arg0: i32) -> (i32, i32) {
    %c0_i32 = arith.constant 0 : i32
    %c0_i32_0 = arith.constant 0 : i32
    %c0_i32_1 = arith.constant 0 : i32
    return %c0_i32, %c0_i32_0 : i32, i32
  }
  func.func @transform_5(%arg0: i32) -> (i32, i32) {
    %c0_i32 = arith.constant 0 : i32
    %c0_i32_0 = arith.constant 0 : i32
    %c0_i32_1 = arith.constant 0 : i32
    return %c0_i32, %c0_i32_0 : i32, i32
  }
  func.func @transform_6(%arg0: i32) -> (i32, i32) {
    %c0_i32 = arith.constant 0 : i32
    %c0_i32_0 = arith.constant 0 : i32
    %c0_i32_1 = arith.constant 0 : i32
    return %c0_i32, %c0_i32_0 : i32, i32
  }
  func.func @transform_7(%arg0: i32) -> (i32, i32) {
    %c0_i32 = arith.constant 0 : i32
    %c0_i32_0 = arith.constant 0 : i32
    %c0_i32_1 = arith.constant 0 : i32
    return %c0_i32, %c0_i32_0 : i32, i32
  }
  func.func @transform_8(%arg0: i32) -> (i32, i32) {
    %c0_i32 = arith.constant 0 : i32
    %c0_i32_0 = arith.constant 0 : i32
    return %arg0, %c0_i32 : i32, i32
  }
}

</mosaic_0001>

<llo_original>
// kernel: tpu_custom_call.1
$region0: #{tpu_custom_call.1}
  #allocation0 [shape = 'u32[]', space=smem, size = 0x4, offset = 0x4, fixed_abs, tag = 'smem constant byte address 0x4 - core index']
  #allocation1 [shape = 'u32[72,128]{1,0:T(1,128)}', space=vmem, size = 0x9000, scoped, tag = 'internal scratch']
  %s0 = inlined_call_operand.vmem [shape: f32[8,1], index: 0, kind: input, shape index: {}]
  %s1 = inlined_call_operand.vmem [shape: f32[8,4], index: 1, kind: input, shape index: {}]
  %s2 = inlined_call_operand.vmem [shape: bf16[4,256], index: 2, kind: input, shape index: {}]
  %s3 = inlined_call_operand.vmem [shape: f32[1,256], index: 3, kind: input, shape index: {}]
  %s4 = inlined_call_operand.hbm [shape: bf16[256,256], index: 4, kind: input, shape index: {}]
  %s5 = inlined_call_operand.vmem [shape: f32[1,256], index: 5, kind: input, shape index: {}]
  %s6 = inlined_call_operand.vmem [shape: bf16[256,8], index: 6, kind: input, shape index: {}]
  %s7 = inlined_call_operand.vmem [shape: f32[1,8], index: 7, kind: input, shape index: {}]
  %s8 = inlined_call_operand.hbm [shape: f32[8,8], index: 8, kind: output, shape index: {}]
  %s9 = sld [smem:[#allocation0]]
  $region46: #{tpu_custom_call.1} parent=0
    _
  %s11 = ssub.s32 1, %s9
  %s12 = scalar_select 0, %s11, %s9
  $region1: #{tpu_custom_call.1} parent=0
    #allocation2 [shape = 'u8[131072]{0}', space=vmem, size = 0x20000, scoped, tag = 'input window, operand 4, single buffered']
    #allocation3 [shape = 's32[1]{0}', space=sflag, size = 0x4, scoped, tag = 'scoped memory for tpu_custom_call.1']
    #allocation4 [shape = 's32[1]{0}', space=sflag, size = 0x4, scoped, tag = 'scoped memory for tpu_custom_call.1']
    #allocation5 [shape = 'u8[4096]{0}', space=vmem, size = 0x1000, scoped, tag = 'output window, operand 0, single buffered']
    %13 = vsyncpa [#allocation3], 0
    %14 = vsyncpa [#allocation4], 0
    // Predicated region
    $region2: #{tpu_custom_call.1} parent=1 // pred_check
      _
    $region3: #{tpu_custom_call.1} parent=1 // pred_check_branch
      %16 = sbr.rel (0) target = $region5
    $region4: #{tpu_custom_call.1} parent=1 // pred_region
      _
    $region5: #{tpu_custom_call.1} parent=1 // pred_fallthru
      _
    // Predicated region
    $region6: #{tpu_custom_call.1} parent=1 // pred_check
      _
    $region7: #{tpu_custom_call.1} parent=1 // pred_check_branch
      %18 = sbr.rel (0) target = $region9
    $region8: #{tpu_custom_call.1} parent=1 // pred_region
      _
    $region9: #{tpu_custom_call.1} parent=1 // pred_fallthru
      _
    // Predicated region
    $region10: #{tpu_custom_call.1} parent=1 // pred_check
      _
    $region11: #{tpu_custom_call.1} parent=1 // pred_check_branch
      %20 = sbr.rel (0) target = $region13
    $region12: #{tpu_custom_call.1} parent=1 // pred_region
      _
    $region13: #{tpu_custom_call.1} parent=1 // pred_fallthru
      _
    // Predicated region
    $region14: #{tpu_custom_call.1} parent=1 // pred_check
      _
    $region15: #{tpu_custom_call.1} parent=1 // pred_check_branch
      %22 = sbr.rel (0) target = $region17
    $region16: #{tpu_custom_call.1} parent=1 // pred_region
      _
    $region17: #{tpu_custom_call.1} parent=1 // pred_fallthru
      _
    // Predicated region
    $region18: #{tpu_custom_call.1} parent=1 // pred_check
      _
    $region19: #{tpu_custom_call.1} parent=1 // pred_check_branch
      %24 = sbr.rel (0) target = $region21
    $region20: #{tpu_custom_call.1} parent=1 // pred_region
      %26 = vsyncadd [#allocation3], 0
      %s27 = sshll.u32 %s4, 4
      %s28 = int_to_ptr.hbm [resolvable:$true] %s27
      %s29 = sshll.u32 [#allocation2], 4
      %s30 = int_to_ptr.vmem [resolvable:$true] %s29
      %35 = dma.hbm_to_vmem [thread:$0]  %s28, 4096, %s30, [#allocation3], 128, 128, 8
    $region21: #{tpu_custom_call.1} parent=1 // pred_fallthru
      _
    // Predicated region
    $region22: #{tpu_custom_call.1} parent=1 // pred_check
      _
    $region23: #{tpu_custom_call.1} parent=1 // pred_check_branch
      %37 = sbr.rel (0) target = $region25
    $region24: #{tpu_custom_call.1} parent=1 // pred_region
      _
    $region25: #{tpu_custom_call.1} parent=1 // pred_fallthru
      _
    // Predicated region
    $region26: #{tpu_custom_call.1} parent=1 // pred_check
      _
    $region27: #{tpu_custom_call.1} parent=1 // pred_check_branch
      %39 = sbr.rel (0) target = $region29
    $region28: #{tpu_custom_call.1} parent=1 // pred_region
      _
    $region29: #{tpu_custom_call.1} parent=1 // pred_fallthru
      _
    // Predicated region
    $region30: #{tpu_custom_call.1} parent=1 // pred_check
      _
    $region31: #{tpu_custom_call.1} parent=1 // pred_check_branch
      %41 = sbr.rel (0) target = $region33
    $region32: #{tpu_custom_call.1} parent=1 // pred_region
      _
    $region33: #{tpu_custom_call.1} parent=1 // pred_fallthru
      _
    // Predicated region
    $region34: #{tpu_custom_call.1} parent=1 // pred_check
      _
    $region35: #{tpu_custom_call.1} parent=1 // pred_check_branch
      %43 = sbr.rel (0) target = $region37
    $region36: #{tpu_custom_call.1} parent=1 // pred_region
      %45 = dma.done [#allocation3], 4096
    $region37: #{tpu_custom_call.1} parent=1 // pred_fallthru
      _
    %v47 = vld [vmem:[%s1] sm:$0xff]
    %v48 = vpack.c.bf16 %v47, %v47
    %v49 = vld [vmem:[%s2] sm:$0xf]
    %v50 = vld [vmem:[%s3] sm:$0x3]
    %v52 = vperm.slane %v50, 0
    %v53 = vperm.slane %v50, 1
    %57 = vst [vmem:[#allocation1] ss:$4 sm:$0xff] %v49
    %v58 = vld.sshfl [vmem:[#allocation1] sm:$0xff pattern:$0x73625140]
    %v59 = vld.sshfl [vmem:[#allocation1 + $0x8] sm:$0xff pattern:$0x73625140]
    %vm60 = vcmask 31744
    %v62 = vsel %vm60, %v48, 0
    %vm64 = vcmask 1041408
    %v65 = vsel %vm64, %v58, 0
    %v67 = vsel %vm64, %v59, 0
    %69 = vmatpush.bf16.msra.mxu0 0
    %70 = vmatpush.bf16.msra.mxu0 0
    %71 = vmatpush.bf16.msra.mxu0 0
    %72 = vmatpush.bf16.msra.mxu0 0
    %73 = vmatpush.bf16.msra.mxu0 0
    %74 = vmatpush.bf16.msra.mxu0 0
    %75 = vmatpush.bf16.msra.mxu0 0
    %76 = vmatpush.bf16.msra.mxu0 %v65
    %77 = vmatmul.bf16.gmra.mxu0 %v62
    %v78 = vpop.f32.mrf.mxu0
    %v79 = vadd.f32 %v52, %v78
    %v80 = vpop.f32.mrf.mxu0
    %81 = vdwg.mxu0
    %82 = vmatpush.bf16.msra.mxu0 0
    %83 = vmatpush.bf16.msra.mxu0 0
    %84 = vmatpush.bf16.msra.mxu0 0
    %85 = vmatpush.bf16.msra.mxu0 0
    %86 = vmatpush.bf16.msra.mxu0 0
    %87 = vmatpush.bf16.msra.mxu0 0
    %88 = vmatpush.bf16.msra.mxu0 0
    %89 = vmatpush.bf16.msra.mxu0 %v67
    %90 = vmatmul.bf16.gmra.mxu0 %v62
    %v91 = vpop.f32.mrf.mxu0
    %v92 = vadd.f32 %v53, %v91
    %v93 = vpop.f32.mrf.mxu0
    %94 = vdwg.mxu0
    %v95 = vmax.f32 %v79, 0.0
    %v96 = vmax.f32 %v92, 0.0
    %v97 = vpack.c.bf16 %v95, %v95
    %v98 = vpack.c.bf16 %v96, %v96
    %v99 = vld [vmem:[#allocation2] sm:$0xff]
    %v100 = vld [vmem:[#allocation2 + $0x8] sm:$0xff]
    %v101 = vld [vmem:[#allocation2 + $0x10] sm:$0xff]
    %v102 = vld [vmem:[#allocation2 + $0x18] sm:$0xff]
    %v103 = vld [vmem:[#allocation2 + $0x20] sm:$0xff]
    %v104 = vld [vmem:[#allocation2 + $0x28] sm:$0xff]
    %v105 = vld [vmem:[#allocation2 + $0x30] sm:$0xff]
    %v106 = vld [vmem:[#allocation2 + $0x38] sm:$0xff]
    %v107 = vld [vmem:[#allocation2 + $0x40] sm:$0xff]
    %v108 = vld [vmem:[#allocation2 + $0x48] sm:$0xff]
    %v109 = vld [vmem:[#allocation2 + $0x50] sm:$0xff]
    %v110 = vld [vmem:[#allocation2 + $0x58] sm:$0xff]
    %v111 = vld [vmem:[#allocation2 + $0x60] sm:$0xff]
    %v112 = vld [vmem:[#allocation2 + $0x68] sm:$0xff]
    %v113 = vld [vmem:[#allocation2 + $0x70] sm:$0xff]
    %v114 = vld [vmem:[#allocation2 + $0x78] sm:$0xff]
    %v115 = vld [vmem:[#allocation2 + $0x80] sm:$0xff]
    %v116 = vld [vmem:[#allocation2 + $0x88] sm:$0xff]
    %v117 = vld [vmem:[#allocation2 + $0x90] sm:$0xff]
    %v118 = vld [vmem:[#allocation2 + $0x98] sm:$0xff]
    %v119 = vld [vmem:[#allocation2 + $0xa0] sm:$0xff]
    %v120 = vld [vmem:[#allocation2 + $0xa8] sm:$0xff]
    %v121 = vld [vmem:[#allocation2 + $0xb0] sm:$0xff]
    %v122 = vld [vmem:[#allocation2 + $0xb8] sm:$0xff]
    %v123 = vld [vmem:[#allocation2 + $0xc0] sm:$0xff]
    %v124 = vld [vmem:[#allocation2 + $0xc8] sm:$0xff]
    %v125 = vld [vmem:[#allocation2 + $0xd0] sm:$0xff]
    %v126 = vld [vmem:[#allocation2 + $0xd8] sm:$0xff]
    %v127 = vld [vmem:[#allocation2 + $0xe0] sm:$0xff]
    %v128 = vld [vmem:[#allocation2 + $0xe8] sm:$0xff]
    %v129 = vld [vmem:[#allocation2 + $0xf0] sm:$0xff]
    %v130 = vld [vmem:[#allocation2 + $0xf8] sm:$0xff]
    %v131 = vld [vmem:[%s5] sm:$0x3]
    %v133 = vperm.slane %v131, 0
    %v134 = vperm.slane %v131, 1
    %v169 = vunpack.c.l.b16 %v99
    %v170 = vunpack.c.h.b16 %v99
    %v171 = vunpack.c.l.b16 %v100
    %v172 = vunpack.c.h.b16 %v100
    %v173 = vunpack.c.l.b16 %v101
    %v174 = vunpack.c.h.b16 %v101
    %v175 = vunpack.c.l.b16 %v102
    %v176 = vunpack.c.h.b16 %v102
    %v177 = vunpack.c.l.b16 %v103
    %v178 = vunpack.c.h.b16 %v103
    %v179 = vunpack.c.l.b16 %v104
    %v180 = vunpack.c.h.b16 %v104
    %v181 = vunpack.c.l.b16 %v105
    %v182 = vunpack.c.h.b16 %v105
    %v183 = vunpack.c.l.b16 %v106
    %v184 = vunpack.c.h.b16 %v106
    %v185 = vunpack.c.l.b16 %v107
    %v186 = vunpack.c.h.b16 %v107
    %v187 = vunpack.c.l.b16 %v108
    %v188 = vunpack.c.h.b16 %v108
    %v189 = vunpack.c.l.b16 %v109
    %v190 = vunpack.c.h.b16 %v109
    %v191 = vunpack.c.l.b16 %v110
    %v192 = vunpack.c.h.b16 %v110
    %v193 = vunpack.c.l.b16 %v111
    %v194 = vunpack.c.h.b16 %v111
    %v195 = vunpack.c.l.b16 %v112
    %v196 = vunpack.c.h.b16 %v112
    %v197 = vunpack.c.l.b16 %v113
    %v198 = vunpack.c.h.b16 %v113
    %v199 = vunpack.c.l.b16 %v114
    %v200 = vunpack.c.h.b16 %v114
    %v201 = vunpack.c.l.b16 %v115
    %v202 = vunpack.c.h.b16 %v115
    %v203 = vunpack.c.l.b16 %v116
    %v204 = vunpack.c.h.b16 %v116
    %v205 = vunpack.c.l.b16 %v117
    %v206 = vunpack.c.h.b16 %v117
    %v207 = vunpack.c.l.b16 %v118
    %v208 = vunpack.c.h.b16 %v118
    %v209 = vunpack.c.l.b16 %v119
    %v210 = vunpack.c.h.b16 %v119
    %v211 = vunpack.c.l.b16 %v120
    %v212 = vunpack.c.h.b16 %v120
    %v213 = vunpack.c.l.b16 %v121
    %v214 = vunpack.c.h.b16 %v121
    %v215 = vunpack.c.l.b16 %v122
    %v216 = vunpack.c.h.b16 %v122
    %v217 = vunpack.c.l.b16 %v123
    %v218 = vunpack.c.h.b16 %v123
    %v219 = vunpack.c.l.b16 %v124
    %v220 = vunpack.c.h.b16 %v124
    %v221 = vunpack.c.l.b16 %v125
    %v222 = vunpack.c.h.b16 %v125
    %v223 = vunpack.c.l.b16 %v126
    %v224 = vunpack.c.h.b16 %v126
    %v225 = vunpack.c.l.b16 %v127
    %v226 = vunpack.c.h.b16 %v127
    %v227 = vunpack.c.l.b16 %v128
    %v228 = vunpack.c.h.b16 %v128
    %v229 = vunpack.c.l.b16 %v129
    %v230 = vunpack.c.h.b16 %v129
    %v231 = vunpack.c.l.b16 %v130
    %v232 = vunpack.c.h.b16 %v130
    %v233 = vpack.c.b16 %v171, %v169
    %v234 = vpack.c.b16 %v172, %v170
    %v235 = vpack.c.b16 %v175, %v173
    %v236 = vpack.c.b16 %v176, %v174
    %v237 = vpack.c.b16 %v179, %v177
    %v238 = vpack.c.b16 %v180, %v178
    %v239 = vpack.c.b16 %v183, %v181
    %v240 = vpack.c.b16 %v184, %v182
    %v241 = vpack.c.b16 %v187, %v185
    %v242 = vpack.c.b16 %v188, %v186
    %v243 = vpack.c.b16 %v191, %v189
    %v244 = vpack.c.b16 %v192, %v190
    %v245 = vpack.c.b16 %v195, %v193
    %v246 = vpack.c.b16 %v196, %v194
    %v247 = vpack.c.b16 %v199, %v197
    %v248 = vpack.c.b16 %v200, %v198
    %v249 = vpack.c.b16 %v203, %v201
    %v250 = vpack.c.b16 %v204, %v202
    %v251 = vpack.c.b16 %v207, %v205
    %v252 = vpack.c.b16 %v208, %v206
    %v253 = vpack.c.b16 %v211, %v209
    %v254 = vpack.c.b16 %v212, %v210
    %v255 = vpack.c.b16 %v215, %v213
    %v256 = vpack.c.b16 %v216, %v214
    %v257 = vpack.c.b16 %v219, %v217
    %v258 = vpack.c.b16 %v220, %v218
    %v259 = vpack.c.b16 %v223, %v221
    %v260 = vpack.c.b16 %v224, %v222
    %v261 = vpack.c.b16 %v227, %v225
    %v262 = vpack.c.b16 %v228, %v226
    %v263 = vpack.c.b16 %v231, %v229
    %v264 = vpack.c.b16 %v232, %v230
    %297 = vmatpush.bf16.msra.mxu0 %v247
    %298 = vmatpush.bf16.msra.mxu0 %v245
    %299 = vmatpush.bf16.msra.mxu0 %v243
    %300 = vmatpush.bf16.msra.mxu0 %v241
    %301 = vmatpush.bf16.msra.mxu0 %v239
    %302 = vmatpush.bf16.msra.mxu0 %v237
    %303 = vmatpush.bf16.msra.mxu0 %v235
    %304 = vmatpush.bf16.msra.mxu0 %v233
    %305 = vmatmul.bf16.gmra.mxu0 %v97
    %v306 = vpop.f32.mrf.mxu0
    %v307 = vadd.f32 %v133, %v306
    %v308 = vpop.f32.mrf.mxu0
    %309 = vdwg.mxu0
    %310 = vmatpush.bf16.msra.mxu0 %v263
    %311 = vmatpush.bf16.msra.mxu0 %v261
    %312 = vmatpush.bf16.msra.mxu0 %v259
    %313 = vmatpush.bf16.msra.mxu0 %v257
    %314 = vmatpush.bf16.msra.mxu0 %v255
    %315 = vmatpush.bf16.msra.mxu0 %v253
    %316 = vmatpush.bf16.msra.mxu0 %v251
    %317 = vmatpush.bf16.msra.mxu0 %v249
    %318 = vmatmul.bf16.gmra.mxu0 %v98
    %v319 = vpop.f32.mrf.mxu0
    %v320 = vadd.f32 %v307, %v319
    %v321 = vpop.f32.mrf.mxu0
    %322 = vdwg.mxu0
    %323 = vmatpush.bf16.msra.mxu0 %v248
    %324 = vmatpush.bf16.msra.mxu0 %v246
    %325 = vmatpush.bf16.msra.mxu0 %v244
    %326 = vmatpush.bf16.msra.mxu0 %v242
    %327 = vmatpush.bf16.msra.mxu0 %v240
    %328 = vmatpush.bf16.msra.mxu0 %v238
    %329 = vmatpush.bf16.msra.mxu0 %v236
    %330 = vmatpush.bf16.msra.mxu0 %v234
    %331 = vmatmul.bf16.gmra.mxu0 %v97
    %v332 = vpop.f32.mrf.mxu0
    %v333 = vadd.f32 %v134, %v332
    %v334 = vpop.f32.mrf.mxu0
    %335 = vdwg.mxu0
    %336 = vmatpush.bf16.msra.mxu0 %v264
    %337 = vmatpush.bf16.msra.mxu0 %v262
    %338 = vmatpush.bf16.msra.mxu0 %v260
    %339 = vmatpush.bf16.msra.mxu0 %v258
    %340 = vmatpush.bf16.msra.mxu0 %v256
    %341 = vmatpush.bf16.msra.mxu0 %v254
    %342 = vmatpush.bf16.msra.mxu0 %v252
    %343 = vmatpush.bf16.msra.mxu0 %v250
    %344 = vmatmul.bf16.gmra.mxu0 %v98
    %v345 = vpop.f32.mrf.mxu0
    %v346 = vadd.f32 %v333, %v345
    %v347 = vpop.f32.mrf.mxu0
    %348 = vdwg.mxu0
    %v349 = vmax.f32 %v320, 0.0
    %v350 = vmax.f32 %v346, 0.0
    %v351 = vpack.c.bf16 %v349, %v349
    %v352 = vpack.c.bf16 %v350, %v350
    %v353 = vld [vmem:[%s6] sm:$0xf]
    %v354 = vld [vmem:[%s6 + $0x4] sm:$0xf]
    %v355 = vld [vmem:[%s6 + $0x8] sm:$0xf]
    %v356 = vld [vmem:[%s6 + $0xc] sm:$0xf]
    %v357 = vld [vmem:[%s6 + $0x10] sm:$0xf]
    %v358 = vld [vmem:[%s6 + $0x14] sm:$0xf]
    %v359 = vld [vmem:[%s6 + $0x18] sm:$0xf]
    %v360 = vld [vmem:[%s6 + $0x1c] sm:$0xf]
    %v361 = vld [vmem:[%s6 + $0x20] sm:$0xf]
    %v362 = vld [vmem:[%s6 + $0x24] sm:$0xf]
    %v363 = vld [vmem:[%s6 + $0x28] sm:$0xf]
    %v364 = vld [vmem:[%s6 + $0x2c] sm:$0xf]
    %v365 = vld [vmem:[%s6 + $0x30] sm:$0xf]
    %v366 = vld [vmem:[%s6 + $0x34] sm:$0xf]
    %v367 = vld [vmem:[%s6 + $0x38] sm:$0xf]
    %v368 = vld [vmem:[%s6 + $0x3c] sm:$0xf]
    %v369 = vld [vmem:[%s6 + $0x40] sm:$0xf]
    %v370 = vld [vmem:[%s6 + $0x44] sm:$0xf]
    %v371 = vld [vmem:[%s6 + $0x48] sm:$0xf]
    %v372 = vld [vmem:[%s6 + $0x4c] sm:$0xf]
    %v373 = vld [vmem:[%s6 + $0x50] sm:$0xf]
    %v374 = vld [vmem:[%s6 + $0x54] sm:$0xf]
    %v375 = vld [vmem:[%s6 + $0x58] sm:$0xf]
    %v376 = vld [vmem:[%s6 + $0x5c] sm:$0xf]
    %v377 = vld [vmem:[%s6 + $0x60] sm:$0xf]
    %v378 = vld [vmem:[%s6 + $0x64] sm:$0xf]
    %v379 = vld [vmem:[%s6 + $0x68] sm:$0xf]
    %v380 = vld [vmem:[%s6 + $0x6c] sm:$0xf]
    %v381 = vld [vmem:[%s6 + $0x70] sm:$0xf]
    %v382 = vld [vmem:[%s6 + $0x74] sm:$0xf]
    %v383 = vld [vmem:[%s6 + $0x78] sm:$0xf]
    %v384 = vld [vmem:[%s6 + $0x7c] sm:$0xf]
    %v385 = vld [vmem:[%s7] sm:$0x1]
    %v387 = vperm.slane %v385, 0
    %v421 = vunpack.c.l.b16 %v353
    %v422 = vunpack.c.l.b16 %v354
    %v423 = vunpack.c.l.b16 %v355
    %v424 = vunpack.c.l.b16 %v356
    %v425 = vunpack.c.l.b16 %v357
    %v426 = vunpack.c.l.b16 %v358
    %v427 = vunpack.c.l.b16 %v359
    %v428 = vunpack.c.l.b16 %v360
    %v429 = vunpack.c.l.b16 %v361
    %v430 = vunpack.c.l.b16 %v362
    %v431 = vunpack.c.l.b16 %v363
    %v432 = vunpack.c.l.b16 %v364
    %v433 = vunpack.c.l.b16 %v365
    %v434 = vunpack.c.l.b16 %v366
    %v435 = vunpack.c.l.b16 %v367
    %v436 = vunpack.c.l.b16 %v368
    %v437 = vunpack.c.l.b16 %v369
    %v438 = vunpack.c.l.b16 %v370
    %v439 = vunpack.c.l.b16 %v371
    %v440 = vunpack.c.l.b16 %v372
    %v441 = vunpack.c.l.b16 %v373
    %v442 = vunpack.c.l.b16 %v374
    %v443 = vunpack.c.l.b16 %v375
    %v444 = vunpack.c.l.b16 %v376
    %v445 = vunpack.c.l.b16 %v377
    %v446 = vunpack.c.l.b16 %v378
    %v447 = vunpack.c.l.b16 %v379
    %v448 = vunpack.c.l.b16 %v380
    %v449 = vunpack.c.l.b16 %v381
    %v450 = vunpack.c.l.b16 %v382
    %v451 = vunpack.c.l.b16 %v383
    %v452 = vunpack.c.l.b16 %v384
    %v453 = vpack.c.b16 %v422, %v421
    %v454 = vpack.c.b16 %v424, %v423
    %v455 = vpack.c.b16 %v426, %v425
    %v456 = vpack.c.b16 %v428, %v427
    %v457 = vpack.c.b16 %v430, %v429
    %v458 = vpack.c.b16 %v432, %v431
    %v459 = vpack.c.b16 %v434, %v433
    %v460 = vpack.c.b16 %v436, %v435
    %v461 = vpack.c.b16 %v438, %v437
    %v462 = vpack.c.b16 %v440, %v439
    %v463 = vpack.c.b16 %v442, %v441
    %v464 = vpack.c.b16 %v444, %v443
    %v465 = vpack.c.b16 %v446, %v445
    %v466 = vpack.c.b16 %v448, %v447
    %v467 = vpack.c.b16 %v450, %v449
    %v468 = vpack.c.b16 %v452, %v451
    %485 = vmatpush.bf16.msra.mxu0 %v460
    %486 = vmatpush.bf16.msra.mxu0 %v459
    %487 = vmatpush.bf16.msra.mxu0 %v458
    %488 = vmatpush.bf16.msra.mxu0 %v457
    %489 = vmatpush.bf16.msra.mxu0 %v456
    %490 = vmatpush.bf16.msra.mxu0 %v455
    %491 = vmatpush.bf16.msra.mxu0 %v454
    %492 = vmatpush.bf16.msra.mxu0 %v453
    %493 = vmatmul.bf16.gmra.mxu0 %v351
    %v494 = vpop.f32.mrf.mxu0
    %v495 = vadd.f32 %v387, %v494
    %v496 = vpop.f32.mrf.mxu0
    %497 = vdwg.mxu0
    %498 = vmatpush.bf16.msra.mxu0 %v468
    %499 = vmatpush.bf16.msra.mxu0 %v467
    %500 = vmatpush.bf16.msra.mxu0 %v466
    %501 = vmatpush.bf16.msra.mxu0 %v465
    %502 = vmatpush.bf16.msra.mxu0 %v464
    %503 = vmatpush.bf16.msra.mxu0 %v463
    %504 = vmatpush.bf16.msra.mxu0 %v462
    %505 = vmatpush.bf16.msra.mxu0 %v461
    %506 = vmatmul.bf16.gmra.mxu0 %v352
    %v507 = vpop.f32.mrf.mxu0
    %v508 = vadd.f32 %v495, %v507
    %v509 = vpop.f32.mrf.mxu0
    %510 = vdwg.mxu0
    %512 = vrot.lane.b32.xlu0 %v508, 127
    %v513 = vpop.permute.xlu0 %512
    %v515 = vmax.f32 %v508, %v513
    %v516 = vsub.f32 %v508, %v515
    %v517 = vmul.f32 %v516, 1.442695
    %v518 = vpow.pop %v517
    %520 = vrot.lane.b32.xlu0 %v515, 1
    %v521 = vpop.permute.xlu0 %520
    %v523 = vsub.f32 %v508, %v521
    %v524 = vmul.f32 %v523, 1.442695
    %v525 = vpow.pop %v524
    %527 = vrot.lane.b32.xlu0 %v525, 127
    %v528 = vpop.permute.xlu0 %527
    %v530 = vadd.f32 %v518, %v528
    %v531 = vlog2.pop %v530
    %v532 = vmul.f32 %v531, 0.6931472
    %v533 = vadd.f32 %v515, %v532
    %v534 = vsub.f32 %v508, %v533
    %536 = vrot.lane.b32.xlu0 %v533, 1
    %v537 = vpop.permute.xlu0 %536
    %v539 = vsub.f32 %v508, %v537
    %v540 = vld [vmem:[%s0] sm:$0xff]
    %v541 = vmul.f32 %v534, 1.442695
    %v542 = vpow.pop %v541
    %vm543 = vcmp.ge.f32.partialorder %v540, %v542
    %v544 = vsel %vm543, 1, 0
    %v545 = vcvt.s32.f32 %v544
    %547 = vrot.lane.b32.xlu0 %v539, 127
    %v548 = vpop.permute.xlu0 %547
    %v550 = vsel %vm543, %v548, %v534
    %vm551 = vcmask 7168
    %552 = vst.msk [vmem:[#allocation5] sm:$0xff] %vm551, %v550
    %554 = vrot.lane.b32.xlu0 %v545, 1
    %v555 = vpop.permute.xlu0 %554
    %vm557 = vcmask 15368
    %558 = vst.msk [vmem:[#allocation5] sm:$0xff] %vm557, %v555
    %560 = vrot.lane.b32.xlu0 %v534, 2
    %v561 = vpop.permute.xlu0 %560
    %vm563 = vcmask 23568
    %564 = vst.msk [vmem:[#allocation5] sm:$0xff] %vm563, %v561
    %565 = vrot.lane.b32.xlu0 %v539, 2
    %v566 = vpop.permute.xlu0 %565
    %vm568 = vcmask 31768
    %569 = vst.msk [vmem:[#allocation5] sm:$0xff] %vm568, %v566
    %570 = vrot.lane.b32.xlu0 %v508, 2
    %v571 = vpop.permute.xlu0 %570
    %vm573 = vcmask 39968
    %574 = vst.msk [vmem:[#allocation5] sm:$0xff] %vm573, %v571
    %vm575 = vcmask 64552
    %576 = vst.msk [vmem:[#allocation5] sm:$0xff] %vm575, 0.0
    // Predicated region
    $region38: #{tpu_custom_call.1} parent=1 // pred_check
      _
    $region39: #{tpu_custom_call.1} parent=1 // pred_check_branch
      %578 = sbr.rel (0) target = $region41
    $region40: #{tpu_custom_call.1} parent=1 // pred_region
      %580 = vsyncadd [#allocation4], 0
      %s582 = sshll.u32 [#allocation5], 4
      %s583 = int_to_ptr.vmem [resolvable:$true] %s582
      %s584 = sshll.u32 %s8, 4
      %s585 = int_to_ptr.hbm [resolvable:$true] %s584
      %587 = dma.vmem_to_hbm [thread:$0]  %s583, 128, %s585, [#allocation4]
    $region41: #{tpu_custom_call.1} parent=1 // pred_fallthru
      _
    // Predicated region
    $region42: #{tpu_custom_call.1} parent=1 // pred_check
      _
    $region43: #{tpu_custom_call.1} parent=1 // pred_check_branch
      %589 = sbr.rel (0) target = $region45
    $region44: #{tpu_custom_call.1} parent=1 // pred_region
      %591 = dma.done [#allocation4], 128
    $region45: #{tpu_custom_call.1} parent=1 // pred_fallthru
      _
    %592 = vsyncpa [#allocation3], 1
    %593 = vsyncpa [#allocation4], 1

</llo_original>
